<compile_context>
chip_gen: v6e
topology: v6e:2x2x1
jax: 0.10.0
libtpu: 0.0.40
codegen_flags: <defaults>
</compile_context>

<pallas_src>
import functools

import jax
import jax.numpy as jnp
from jax import lax
from jax.experimental import pallas as pl
from jax.experimental.pallas import tpu as pltpu


def _round_up(x, m):
    return ((x + m - 1) // m) * m


def _lane_fold_128(v):
    """Fold (C, W) -> (C, 128) using lane-aligned slices + VALU adds only.

    W must be a multiple of 128. Log-depth (small trace even for very wide
    tiles) and emits no cross-lane (XLU) work.
    """
    w = v.shape[-1]
    tail = None
    while w > 128:
        if (w // 128) % 2 == 1:          # peel one 128-lane column group
            t = v[:, w - 128:w]
            tail = t if tail is None else tail + t
            w -= 128
            v = v[:, :w]
        half = w // 2                     # halves stay multiples of 128
        v = v[:, :half] + v[:, half:w]
        w = half
    return v if tail is None else v + tail


def _dice_sums_kernel(x_ref, t_ref, num_ref, den_ref, *, ignore_index, hw,
                      tile_hw, inner_tiles, exact_cover):
    s = pl.program_id(1)   # megacore pixel-split axis ("parallel")
    i = pl.program_id(2)   # pixel-tile reduction axis ("arbitrary")

    @pl.when(i == 0)
    def _init():
        num_ref[...] = jnp.zeros(num_ref.shape, num_ref.dtype)
        den_ref[...] = jnp.zeros(den_ref.shape, den_ref.dtype)

    def accumulate(mask_tail):
        logits = x_ref[0].astype(jnp.float32)        # (C, T) classes on sublanes
        t = t_ref[0].astype(jnp.int32)               # (1, T) lane-dense targets

        valid = None
        if mask_tail:
            start = (s * inner_tiles + i) * tile_hw
            pix = lax.broadcasted_iota(jnp.int32, t.shape, 1) + start
            valid = pix < hw                         # (1, T) in-range lanes
            # Padded lanes may hold garbage; neutralize before the exp so no
            # NaN can leak through a multiply-by-zero.
            logits = jnp.where(valid, logits, 0.0)
        if ignore_index is not None:
            ig_ok = t != ignore_index                # (1, T)
            valid = ig_ok if valid is None else (valid & ig_ok)

        # Softmax over the class (sublane) axis.
        m = jnp.max(logits, axis=0, keepdims=True)   # (1, T)
        e = jnp.exp(logits - m)
        p = e * pl.reciprocal(jnp.sum(e, axis=0, keepdims=True), approx=True)

        # One-hot target: class iota on sublanes vs lane-dense target row.
        cls = lax.broadcasted_iota(jnp.int32, p.shape, 0)      # (C, T)
        onehot_b = cls == t
        if valid is not None:
            onehot = (onehot_b & valid).astype(jnp.float32)
            den_c = (p + onehot) * valid.astype(jnp.float32)
        else:
            onehot = onehot_b.astype(jnp.float32)
            den_c = p + onehot

        # Fold T lanes -> 128 lanes (pure VALU) and accumulate into the
        # resident, lane-dense (1, 1, C, 128) output blocks (unmasked stores).
        num_ref[...] += _lane_fold_128(p * onehot)[None, None]
        den_ref[...] += _lane_fold_128(den_c)[None, None]

    if exact_cover:
        accumulate(False)                            # never any ragged lanes
    else:
        needs_mask = (s * inner_tiles + i + 1) * tile_hw > hw
        pl.when(needs_mask)(lambda: accumulate(True))
        pl.when(jnp.logical_not(needs_mask))(lambda: accumulate(False))


def _choose_tile_hw(hw, c, x_itemsize, t_itemsize):
    """Pick the pixel-tile width by bytes, capped by a conservative VMEM model."""
    target_step_bytes = 4 << 20      # ~4 MiB of HBM per step (>> 0.35 us step cost)
    vmem_budget = 20 << 20           # fits scoped VMEM on v5e/v6e/v7x with margin
    per_px_hbm = c * x_itemsize + t_itemsize
    # Double-buffered input blocks + ~8 live (C, tile) f32 temporaries in-kernel.
    per_px_vmem = 2 * per_px_hbm + 8 * c * 4
    tile = min(target_step_bytes // per_px_hbm, vmem_budget // per_px_vmem)
    tile = max(128, (tile // 128) * 128)
    tile = min(tile, _round_up(hw, 128))
    return int(tile)


def multiclass_dice_loss(output, target, weights=None, ignore_index=None,
                         *, tile_hw=None):
    """output: (N, C, H, W) float (f32 or bf16); target: (N, H, W) int.

    Returns a scalar float32 loss identical to the PyTorch MulticlassDiceLoss.
    """
    N, C, H, W = output.shape
    HW = H * W
    eps = 0.0001

    # Free metadata reshapes (no relayout / extra HBM traffic, dtypes untouched).
    x = output.reshape(N, C, HW)
    t = target.reshape(N, 1, HW)

    if tile_hw is None:
        tile_hw = _choose_tile_hw(HW, C, x.dtype.itemsize, t.dtype.itemsize)
    else:
        tile_hw = max(128, (int(tile_hw) // 128) * 128)
    num_tiles = pl.cdiv(HW, tile_hw)

    # Megacore: split the pixel range across a second "parallel" axis so v7x's
    # two TensorCores are both busy even when N == 1 (no-op on 1-TC chips).
    n_splits = 2 if num_tiles >= 2 else 1
    inner_tiles = pl.cdiv(num_tiles, n_splits)
    exact_cover = (n_splits * inner_tiles * tile_hw == HW)

    def pix_block(n, s, i):
        tg = s * inner_tiles + i
        if n_splits * inner_tiles != num_tiles:
            # Overhanging tiles (odd num_tiles) re-read a valid block; their
            # contributions are fully masked out inside the kernel.
            tg = jnp.minimum(tg, num_tiles - 1)
        return (n, 0, tg)

    kernel = functools.partial(
        _dice_sums_kernel, ignore_index=ignore_index, hw=HW, tile_hw=tile_hw,
        inner_tiles=inner_tiles, exact_cover=exact_cover)

    num, den = pl.pallas_call(
        kernel,
        out_shape=(jax.ShapeDtypeStruct((N, n_splits, C, 128), jnp.float32),
                   jax.ShapeDtypeStruct((N, n_splits, C, 128), jnp.float32)),
        grid_spec=pltpu.PrefetchScalarGridSpec(
            num_scalar_prefetch=0,
            grid=(N, n_splits, inner_tiles),
            in_specs=[
                pl.BlockSpec((1, C, tile_hw), pix_block),
                pl.BlockSpec((1, 1, tile_hw), pix_block),
            ],
            out_specs=[
                pl.BlockSpec((1, 1, C, 128), lambda n, s, i: (n, s, 0, 0)),
                pl.BlockSpec((1, 1, C, 128), lambda n, s, i: (n, s, 0, 0)),
            ],
        ),
        compiler_params=pltpu.CompilerParams(
            dimension_semantics=("parallel", "parallel", "arbitrary"),
            vmem_limit_bytes=32 * 1024 * 1024),
    )(x, t)

    # Tiny final reduce in the wrapper (per-batch / per-split / per-lane partials).
    num = 2.0 * jnp.sum(num, axis=(0, 1, 3))     # (C,)
    den = jnp.sum(den, axis=(0, 1, 3)) + eps     # (C,)

    w = jnp.float32(1.0) if weights is None else weights.astype(jnp.float32)
    loss_per_channel = w * (1.0 - num / den)
    return jnp.sum(loss_per_channel) / C


def _reference(output, target, weights=None, ignore_index=None):
    # Pure-JAX reference of the PyTorch forward, for a sanity check.
    N, C, H, W = output.shape
    p = jax.nn.softmax(output.astype(jnp.float32), axis=1)
    tgt = target
    if ignore_index is not None:
        mask = tgt == ignore_index
        tgt = jnp.where(mask, 0, tgt)
    onehot = jax.nn.one_hot(tgt, C, axis=1, dtype=jnp.float32)
    if ignore_index is not None:
        onehot = jnp.where(mask[:, None], 0.0, onehot)
    inter = p * onehot
    numerator = 2 * inter.sum(0).sum(1).sum(1)
    denom = p + onehot
    if ignore_index is not None:
        denom = jnp.where(mask[:, None], 0.0, denom)
    denominator = denom.sum(0).sum(1).sum(1) + 0.0001
    w = 1.0 if weights is None else weights
    return jnp.sum(w * (1 - numerator / denominator)) / C


if __name__ == "__main__":
    key = jax.random.PRNGKey(0)
    k1, k2, k3 = jax.random.split(key, 3)

    N, C, H, W = 2, 4, 16, 16
    output = jax.random.normal(k1, (N, C, H, W), dtype=jnp.float32)
    target = jax.random.randint(k2, (N, H, W), 0, C, dtype=jnp.int32)
    weights = jax.random.uniform(k3, (C,), dtype=jnp.float32)

    # Basic case (adaptive tile; single tile covers H*W exactly).
    loss = jax.block_until_ready(multiclass_dice_loss(output, target))
    ref = _reference(output, target)
    assert jnp.allclose(loss, ref, atol=2e-3, rtol=2e-3), (loss, ref)

    # Weights + ignore_index.
    loss_wi = jax.block_until_ready(
        multiclass_dice_loss(output, target, weights=weights, ignore_index=1))
    ref_wi = _reference(output, target, weights=weights, ignore_index=1)
    assert jnp.allclose(loss_wi, ref_wi, atol=2e-3, rtol=2e-3), (loss_wi, ref_wi)

    # Forced small tile: exercises multi-tile accumulation + the pixel-split
    # ("parallel") megacore axis.
    loss_mt = jax.block_until_ready(
        multiclass_dice_loss(output, target, tile_hw=128))
    assert jnp.allclose(loss_mt, ref, atol=2e-3, rtol=2e-3), (loss_mt, ref)

    # Ragged spatial size (runtime-gated tail mask), adaptive and forced tiles.
    H2, W2 = 15, 13
    out2 = jax.random.normal(k1, (N, C, H2, W2), dtype=jnp.float32)
    tgt2 = jax.random.randint(k2, (N, H2, W2), 0, C, dtype=jnp.int32)
    ref2 = _reference(out2, tgt2)
    loss2 = jax.block_until_ready(multiclass_dice_loss(out2, tgt2))
    assert jnp.allclose(loss2, ref2, atol=2e-3, rtol=2e-3), (loss2, ref2)
    loss2b = jax.block_until_ready(multiclass_dice_loss(out2, tgt2, tile_hw=128))
    assert jnp.allclose(loss2b, ref2, atol=2e-3, rtol=2e-3), (loss2b, ref2)

    print("KERNEL_OK")
</pallas_src>

<mosaic_0001>
module attributes {stable_mosaic.version = 11 : i64} {
  func.func @_dice_sums_kernel(%arg0: i32, %arg1: i32, %arg2: i32, %arg3: memref<1x4x256xf32, #tpu.memory_space<vmem>>, %arg4: memref<1x1x256xi32, #tpu.memory_space<vmem>>, %arg5: memref<1x1x4x128xf32, #tpu.memory_space<vmem>>, %arg6: memref<1x1x4x128xf32, #tpu.memory_space<vmem>>) attributes {dimension_semantics = [#tpu.dimension_semantics<parallel>, #tpu.dimension_semantics<parallel>, #tpu.dimension_semantics<arbitrary>], iteration_bounds = array<i64: 2, 1, 1>, scalar_prefetch = 0 : i64, scratch_operands = 0 : i64, tpu.core_type = #tpu.core_type<tc>, window_params = [{transform_indices = @transform_0, window_bounds = array<i64: 1, 4, 256>}, {transform_indices = @transform_1, window_bounds = array<i64: 1, 1, 256>}, {transform_indices = @transform_2, window_bounds = array<i64: 1, 1, 4, 128>}, {transform_indices = @transform_3, window_bounds = array<i64: 1, 1, 4, 128>}]} {
    %c0_i32 = arith.constant 0 : i32
    %0 = arith.cmpi eq, %arg2, %c0_i32 : i32
    %1 = arith.extui %0 : i1 to i32
    %c0_i32_0 = arith.constant 0 : i32
    %2 = arith.cmpi ne, %1, %c0_i32_0 : i32
    scf.if %2 {
      %cst_23 = arith.constant 0.000000e+00 : f32
      %38 = vector.broadcast %cst_23 : f32 to vector<1x1x4x128xf32>
      %c0_24 = arith.constant 0 : index
      %c0_25 = arith.constant 0 : index
      %c0_26 = arith.constant 0 : index
      %c0_27 = arith.constant 0 : index
      %39 = vector.load %arg5[%c0_24, %c0_25, %c0_26, %c0_27] : memref<1x1x4x128xf32, #tpu.memory_space<vmem>>, vector<1x1x4x128xf32>
      tpu.vector_store %arg5[%c0_24, %c0_25, %c0_26, %c0_27], %38 {strides = array<i32>} : memref<1x1x4x128xf32, #tpu.memory_space<vmem>>, vector<1x1x4x128xf32>,
      %cst_28 = arith.constant 0.000000e+00 : f32
      %40 = vector.broadcast %cst_28 : f32 to vector<1x1x4x128xf32>
      %c0_29 = arith.constant 0 : index
      %c0_30 = arith.constant 0 : index
      %c0_31 = arith.constant 0 : index
      %c0_32 = arith.constant 0 : index
      %41 = vector.load %arg6[%c0_29, %c0_30, %c0_31, %c0_32] : memref<1x1x4x128xf32, #tpu.memory_space<vmem>>, vector<1x1x4x128xf32>
      tpu.vector_store %arg6[%c0_29, %c0_30, %c0_31, %c0_32], %40 {strides = array<i32>} : memref<1x1x4x128xf32, #tpu.memory_space<vmem>>, vector<1x1x4x128xf32>,
    } else {
    }
    %c0 = arith.constant 0 : index
    %c0_1 = arith.constant 0 : index
    %c0_2 = arith.constant 0 : index
    %3 = vector.load %arg3[%c0, %c0_1, %c0_2] : memref<1x4x256xf32, #tpu.memory_space<vmem>>, vector<1x4x256xf32>
    %4 = vector.shape_cast %3 : vector<1x4x256xf32> to vector<4x256xf32>
    %c0_3 = arith.constant 0 : index
    %c0_4 = arith.constant 0 : index
    %c0_5 = arith.constant 0 : index
    %5 = vector.load %arg4[%c0_3, %c0_4, %c0_5] : memref<1x1x256xi32, #tpu.memory_space<vmem>>, vector<1x1x256xi32>
    %6 = vector.shape_cast %5 : vector<1x1x256xi32> to vector<1x256xi32>
    %cst = arith.constant dense<0xFF800000> : vector<256xf32>
    %7 = vector.multi_reduction <maximumf>, %4, %cst [0] : vector<4x256xf32> to vector<256xf32>
    %8 = vector.shape_cast %7 : vector<256xf32> to vector<1x256xf32>
    %9 = vector.broadcast %8 : vector<1x256xf32> to vector<4x256xf32>
    %10 = arith.subf %4, %9 : vector<4x256xf32>
    %11 = math.exp %10 : vector<4x256xf32>
    %cst_6 = arith.constant dense<0.000000e+00> : vector<256xf32>
    %12 = vector.multi_reduction <add>, %11, %cst_6 [0] : vector<4x256xf32> to vector<256xf32>
    %13 = vector.shape_cast %12 : vector<256xf32> to vector<1x256xf32>
    %14 = tpu.reciprocal %13 {approx = true} : vector<1x256xf32> -> vector<1x256xf32>
    %15 = vector.broadcast %14 : vector<1x256xf32> to vector<4x256xf32>
    %16 = arith.mulf %11, %15 : vector<4x256xf32>
    %17 = tpu.iota {dimensions = array<i32: 0>} : vector<4x256xi32>
    %18 = vector.broadcast %6 : vector<1x256xi32> to vector<4x256xi32>
    %19 = arith.cmpi eq, %17, %18 : vector<4x256xi32>
    %20 = arith.extui %19 : vector<4x256xi1> to vector<4x256xi32>
    %21 = arith.sitofp %20 : vector<4x256xi32> to vector<4x256xf32>
    %22 = arith.addf %16, %21 : vector<4x256xf32>
    %c0_7 = arith.constant 0 : index
    %c0_8 = arith.constant 0 : index
    %c0_9 = arith.constant 0 : index
    %c0_10 = arith.constant 0 : index
    %23 = vector.load %arg5[%c0_7, %c0_8, %c0_9, %c0_10] : memref<1x1x4x128xf32, #tpu.memory_space<vmem>>, vector<1x1x4x128xf32>
    %24 = arith.mulf %16, %21 : vector<4x256xf32>
    %25 = vector.extract_strided_slice %24 {offsets = [0, 0], sizes = [4, 128], strides = [1, 1]} : vector<4x256xf32> to vector<4x128xf32>
    %26 = vector.extract_strided_slice %24 {offsets = [0, 128], sizes = [4, 128], strides = [1, 1]} : vector<4x256xf32> to vector<4x128xf32>
    %27 = arith.addf %25, %26 : vector<4x128xf32>
    %28 = vector.shape_cast %27 : vector<4x128xf32> to vector<1x1x4x128xf32>
    %29 = arith.addf %23, %28 : vector<1x1x4x128xf32>
    %c0_11 = arith.constant 0 : index
    %c0_12 = arith.constant 0 : index
    %c0_13 = arith.constant 0 : index
    %c0_14 = arith.constant 0 : index
    %30 = vector.load %arg5[%c0_11, %c0_12, %c0_13, %c0_14] : memref<1x1x4x128xf32, #tpu.memory_space<vmem>>, vector<1x1x4x128xf32>
    tpu.vector_store %arg5[%c0_11, %c0_12, %c0_13, %c0_14], %29 {strides = array<i32>} : memref<1x1x4x128xf32, #tpu.memory_space<vmem>>, vector<1x1x4x128xf32>,
    %c0_15 = arith.constant 0 : index
    %c0_16 = arith.constant 0 : index
    %c0_17 = arith.constant 0 : index
    %c0_18 = arith.constant 0 : index
    %31 = vector.load %arg6[%c0_15, %c0_16, %c0_17, %c0_18] : memref<1x1x4x128xf32, #tpu.memory_space<vmem>>, vector<1x1x4x128xf32>
    %32 = vector.extract_strided_slice %22 {offsets = [0, 0], sizes = [4, 128], strides = [1, 1]} : vector<4x256xf32> to vector<4x128xf32>
    %33 = vector.extract_strided_slice %22 {offsets = [0, 128], sizes = [4, 128], strides = [1, 1]} : vector<4x256xf32> to vector<4x128xf32>
    %34 = arith.addf %32, %33 : vector<4x128xf32>
    %35 = vector.shape_cast %34 : vector<4x128xf32> to vector<1x1x4x128xf32>
    %36 = arith.addf %31, %35 : vector<1x1x4x128xf32>
    %c0_19 = arith.constant 0 : index
    %c0_20 = arith.constant 0 : index
    %c0_21 = arith.constant 0 : index
    %c0_22 = arith.constant 0 : index
    %37 = vector.load %arg6[%c0_19, %c0_20, %c0_21, %c0_22] : memref<1x1x4x128xf32, #tpu.memory_space<vmem>>, vector<1x1x4x128xf32>
    tpu.vector_store %arg6[%c0_19, %c0_20, %c0_21, %c0_22], %36 {strides = array<i32>} : memref<1x1x4x128xf32, #tpu.memory_space<vmem>>, vector<1x1x4x128xf32>,
    return
  }
  func.func @transform_0(%arg0: i32, %arg1: i32, %arg2: i32) -> (i32, i32, i32) {
    %c1_i32 = arith.constant 1 : i32
    %0 = arith.muli %arg1, %c1_i32 : i32
    %1 = arith.addi %0, %arg2 : i32
    %c0_i32 = arith.constant 0 : i32
    %c0_i32_0 = arith.constant 0 : i32
    return %arg0, %c0_i32, %1 : i32, i32, i32
  }
  func.func @transform_1(%arg0: i32, %arg1: i32, %arg2: i32) -> (i32, i32, i32) {
    %c1_i32 = arith.constant 1 : i32
    %0 = arith.muli %arg1, %c1_i32 : i32
    %1 = arith.addi %0, %arg2 : i32
    %c0_i32 = arith.constant 0 : i32
    %c0_i32_0 = arith.constant 0 : i32
    return %arg0, %c0_i32, %1 : i32, i32, i32
  }
  func.func @transform_2(%arg0: i32, %arg1: i32, %arg2: i32) -> (i32, i32, i32, i32) {
    %c0_i32 = arith.constant 0 : i32
    %c0_i32_0 = arith.constant 0 : i32
    %c0_i32_1 = arith.constant 0 : i32
    return %arg0, %arg1, %c0_i32, %c0_i32_0 : i32, i32, i32, i32
  }
  func.func @transform_3(%arg0: i32, %arg1: i32, %arg2: i32) -> (i32, i32, i32, i32) {
    %c0_i32 = arith.constant 0 : i32
    %c0_i32_0 = arith.constant 0 : i32
    %c0_i32_1 = arith.constant 0 : i32
    return %arg0, %arg1, %c0_i32, %c0_i32_0 : i32, i32, i32, i32
  }
}

</mosaic_0001>

<llo_original>
// kernel: tpu_custom_call.1
$region0: #{tpu_custom_call.1}
  #allocation0 [shape = 'u32[]', space=smem, size = 0x4, offset = 0x4, fixed_abs, tag = 'smem constant byte address 0x4 - core index']
  #allocation1 [shape = 'u32[144,128]{1,0:T(1,128)}', space=vmem, size = 0x12000, scoped, tag = 'internal scratch']
  %s0 = inlined_call_operand.hbm [shape: f32[2,4,256], index: 0, kind: input, shape index: {}]
  %s1 = inlined_call_operand.hbm [shape: s32[2,1,256], index: 1, kind: input, shape index: {}]
  %s2 = inlined_call_operand.hbm [shape: f32[2,1,4,128], index: 2, kind: output, shape index: {0}]
  %s3 = inlined_call_operand.hbm [shape: f32[2,1,4,128], index: 3, kind: output, shape index: {1}]
  %4 = xla_tuple %s2, %s3
  %s5 = sld [smem:[#allocation0]]
  $region61: #{tpu_custom_call.1} parent=0
    _
  %s7 = ssub.s32 1, %s5
  %s8 = scalar_select 0, %s7, %s5
  $region1: #{tpu_custom_call.1} parent=0
    #allocation2 [shape = 'u8[8192]{0}', space=vmem, size = 0x2000, scoped, tag = 'input window, operand 0']
    #allocation3 [shape = 's32[2]{0}', space=sflag, size = 0x8, scoped, tag = 'scoped memory for tpu_custom_call.1']
    #allocation4 [shape = 's32[2]{0}', space=sflag, size = 0x8, scoped, tag = 'scoped memory for tpu_custom_call.1']
    #allocation5 [shape = 'u8[2048]{0}', space=vmem, size = 0x800, scoped, tag = 'input window, operand 1']
    #allocation6 [shape = 's32[2]{0}', space=sflag, size = 0x8, scoped, tag = 'scoped memory for tpu_custom_call.1']
    #allocation7 [shape = 'u8[4096]{0}', space=vmem, size = 0x1000, scoped, tag = 'output window, operand 0']
    #allocation8 [shape = 'u8[4096]{0}', space=vmem, size = 0x1000, scoped, tag = 'output window, operand 1']
    #allocation9 [shape = 's32[2]{0}', space=sflag, size = 0x8, scoped, tag = 'scoped memory for tpu_custom_call.1']
    %9 = vsyncpa [#allocation3], 0
    %s10 = scalar_lea.sflag [#allocation3], 1
    %11 = vsyncpa %s10, 0
    %12 = vsyncpa [#allocation6], 0
    %s13 = scalar_lea.sflag [#allocation6], 1
    %14 = vsyncpa %s13, 0
    %15 = vsyncpa [#allocation4], 0
    %s16 = scalar_lea.sflag [#allocation4], 1
    %17 = vsyncpa %s16, 0
    %18 = vsyncpa [#allocation9], 0
    %s19 = scalar_lea.sflag [#allocation9], 1
    %20 = vsyncpa %s19, 0
    loop: start=0, step=1, limit=4
    $region2: #{tpu_custom_call.1} parent=1 // loop_pre_header
      _
    $region3: #{tpu_custom_call.1} parent=1 // loop_header
      %s22 = sphi 0, %s26
      %p23 = scmp.ge.s32.totalorder %s22, 4
      %s29 = sphi 0, %s48
      %s30 = sphi 0, %s44
      %s31 = sphi 0, %s40
      %s32 = sphi 0, %s29
      %s33 = sphi 0, %s30
      %s34 = sphi 0, %s31
      %s35 = sphi 0, %s32
      %s36 = sphi 0, %s33
      %s37 = sphi 0, %s34
      %s55 = sphi 0, %s57
      %s58 = sphi 0, %s55
      %s59 = sphi 0, %s58
      %s75 = sphi 0, %s59
      %s85 = sphi 0, %s87
      %s88 = sphi 0, %s85
      %s89 = sphi 0, %s88
      %s105 = sphi 0, %s89
      %s113 = sphi 0, %s115
      %s116 = sphi 0, %s113
      %s117 = sphi 0, %s116
      %s133 = sphi 0, %s117
      %s141 = sphi 0, %s143
      %s144 = sphi 0, %s141
      %s145 = sphi 0, %s144
      %s161 = sphi 0, %s145
    $region4: #{tpu_custom_call.1} parent=1 // loop_header_branch
      %25 = sbr.rel (%p23) target = $region8
    $region5: #{tpu_custom_call.1} parent=1 // loop_body
      %s27 = ssub.s32 %s22, 1
      %s28 = ssub.s32 %s22, 2
      %s38 = sadd.s32 1, %s31
      %p39 = scmp.ge.s32.totalorder %s38, 1
      %s40 = scalar_select %p39, 0, %s38
      %s41 = sadd.s32 1, %s30
      %s42 = scalar_select %p39, %s41, %s30
      %p43 = scmp.ge.s32.totalorder %s42, 1
      %s44 = scalar_select %p43, 0, %s42
      %s45 = sadd.s32 1, %s29
      %s46 = scalar_select %p43, %s45, %s29
      %p47 = scmp.ge.s32.totalorder %s46, 2
      %s48 = scalar_select %p47, 0, %s46
      %s49 = sadd.s32 %s30, %s31
      %s50 = sadd.s32 %s44, %s40
      %s51 = ssub.s32 %s29, %s48
      %s52 = ssub.s32 %s49, %s50
      %s53 = sor.u32 %s51, %s52
      %p54 = scmp.eq.s32.totalorder %s53, 0
      %s56 = sadd.s32 %s55, 1
      %s57 = scalar_select %p54, %s55, %s56
      %p60 = pneg %p54
      %p61 = scmp.eq.s32.totalorder %s22, 1
      %p62 = por %p60, %p61
      %p63 = scmp.ne.s32.totalorder %s55, %s58
      %p64 = scmp.eq.s32.totalorder %s22, 0
      %p65 = por %p63, %p64
      %p66 = scmp.ne.s32.totalorder %s55, %s58
      %p67 = scmp.eq.s32.totalorder %s27, 1
      %p68 = por %p66, %p67
      %p69 = scmp.ne.s32.totalorder %s58, %s59
      %p70 = scmp.eq.s32.totalorder %s27, 0
      %p71 = por %p69, %p70
      %p72 = scmp.ne.s32.totalorder %s58, %s59
      %p73 = scmp.eq.s32.totalorder %s28, 1
      %p74 = por %p72, %p73
      %p76 = scmp.ne.s32.totalorder %s59, %s75
      %p77 = scmp.eq.s32.totalorder %s28, 0
      %p78 = por %p76, %p77
      %s79 = sadd.s32 %s30, %s31
      %s80 = sadd.s32 %s44, %s40
      %s81 = ssub.s32 %s29, %s48
      %s82 = ssub.s32 %s79, %s80
      %s83 = sor.u32 %s81, %s82
      %p84 = scmp.eq.s32.totalorder %s83, 0
      %s86 = sadd.s32 %s85, 1
      %s87 = scalar_select %p84, %s85, %s86
      %p90 = pneg %p84
      %p91 = scmp.eq.s32.totalorder %s22, 1
      %p92 = por %p90, %p91
      %p93 = scmp.ne.s32.totalorder %s85, %s88
      %p94 = scmp.eq.s32.totalorder %s22, 0
      %p95 = por %p93, %p94
      %p96 = scmp.ne.s32.totalorder %s85, %s88
      %p97 = scmp.eq.s32.totalorder %s27, 1
      %p98 = por %p96, %p97
      %p99 = scmp.ne.s32.totalorder %s88, %s89
      %p100 = scmp.eq.s32.totalorder %s27, 0
      %p101 = por %p99, %p100
      %p102 = scmp.ne.s32.totalorder %s88, %s89
      %p103 = scmp.eq.s32.totalorder %s28, 1
      %p104 = por %p102, %p103
      %p106 = scmp.ne.s32.totalorder %s89, %s105
      %p107 = scmp.eq.s32.totalorder %s28, 0
      %p108 = por %p106, %p107
      %s109 = ssub.s32 %s29, %s48
      %s110 = ssub.s32 %s30, %s44
      %s111 = sor.u32 %s109, %s110
      %p112 = scmp.eq.s32.totalorder %s111, 0
      %s114 = sadd.s32 %s113, 1
      %s115 = scalar_select %p112, %s113, %s114
      %p118 = pneg %p112
      %p119 = scmp.eq.s32.totalorder %s22, 1
      %p120 = por %p118, %p119
      %p121 = scmp.ne.s32.totalorder %s113, %s116
      %p122 = scmp.eq.s32.totalorder %s22, 0
      %p123 = por %p121, %p122
      %p124 = scmp.ne.s32.totalorder %s113, %s116
      %p125 = scmp.eq.s32.totalorder %s27, 1
      %p126 = por %p124, %p125
      %p127 = scmp.ne.s32.totalorder %s116, %s117
      %p128 = scmp.eq.s32.totalorder %s27, 0
      %p129 = por %p127, %p128
      %p130 = scmp.ne.s32.totalorder %s116, %s117
      %p131 = scmp.eq.s32.totalorder %s28, 1
      %p132 = por %p130, %p131
      %p134 = scmp.ne.s32.totalorder %s117, %s133
      %p135 = scmp.eq.s32.totalorder %s28, 0
      %p136 = por %p134, %p135
      %s137 = ssub.s32 %s29, %s48
      %s138 = ssub.s32 %s30, %s44
      %s139 = sor.u32 %s137, %s138
      %p140 = scmp.eq.s32.totalorder %s139, 0
      %s142 = sadd.s32 %s141, 1
      %s143 = scalar_select %p140, %s141, %s142
      %p146 = pneg %p140
      %p147 = scmp.eq.s32.totalorder %s22, 1
      %p148 = por %p146, %p147
      %p149 = scmp.ne.s32.totalorder %s141, %s144
      %p150 = scmp.eq.s32.totalorder %s22, 0
      %p151 = por %p149, %p150
      %p152 = scmp.ne.s32.totalorder %s141, %s144
      %p153 = scmp.eq.s32.totalorder %s27, 1
      %p154 = por %p152, %p153
      %p155 = scmp.ne.s32.totalorder %s144, %s145
      %p156 = scmp.eq.s32.totalorder %s27, 0
      %p157 = por %p155, %p156
      %p158 = scmp.ne.s32.totalorder %s144, %s145
      %p159 = scmp.eq.s32.totalorder %s28, 1
      %p160 = por %p158, %p159
      %p162 = scmp.ne.s32.totalorder %s145, %s161
      %p163 = scmp.eq.s32.totalorder %s28, 0
      %p164 = por %p162, %p163
      %p165 = scmp.le.s32.totalorder 1, %s22
      %p166 = scmp.lt.s32.totalorder %s22, 3
      %p167 = pnand %p165, %p166
      %p168 = pneg %p167
      // Predicated region
      $region9: #{tpu_custom_call.1} parent=5 // pred_check
        _
      $region10: #{tpu_custom_call.1} parent=5 // pred_check_branch
        %170 = sbr.rel (%p167) target = $region12
      $region11: #{tpu_custom_call.1} parent=5 // pred_region
        %s171 = ssub.s32 %s22, 1
      $region12: #{tpu_custom_call.1} parent=5 // pred_fallthru
        _
      %p172 = scmp.lt.s32.totalorder %s22, 2
      // Predicated region
      $region13: #{tpu_custom_call.1} parent=5 // pred_check
        %p173 = pneg %p172
      $region14: #{tpu_custom_call.1} parent=5 // pred_check_branch
        %175 = sbr.rel (%p173) target = $region16
      $region15: #{tpu_custom_call.1} parent=5 // pred_region
        // Predicated region
        $region17: #{tpu_custom_call.1} parent=15 // pred_check
          %p176 = pneg %p65
        $region18: #{tpu_custom_call.1} parent=15 // pred_check_branch
          %178 = sbr.rel (%p176) target = $region20
        $region19: #{tpu_custom_call.1} parent=15 // pred_region
          %s179 = sand.u32 %s55, 1
          %s180 = scalar_lea.sflag [#allocation3], %s179
          %s181 = sand.u32 %s55, 1
          %s182 = smul.addr %s181, 8
          %s183 = scalar_lea.vmem [#allocation2], %s182
          %s184 = sadd.s32 %s30, %s31
          %s185 = smul.u32 2, %s184
          %s187 = ssub.s32 128, 128
          %188 = vsyncadd %s180, %s187
          %s189 = smul.addr %s29, 2
          %s190 = sadd.s32 %s185, %s189
          %s191 = smul.addr %s190, 64
          %s192 = scalar_lea.hbm %s0, %s191
          %s194 = sshll.u32 %s183, 4
          %s195 = int_to_ptr.vmem [resolvable:$true] %s194
          %197 = dma.hbm_to_vmem [thread:$0]  %s192, 128, %s195, %s180
        $region20: #{tpu_custom_call.1} parent=15 // pred_fallthru
          _
        // Predicated region
        $region21: #{tpu_custom_call.1} parent=15 // pred_check
          %p198 = pneg %p95
        $region22: #{tpu_custom_call.1} parent=15 // pred_check_branch
          %200 = sbr.rel (%p198) target = $region24
        $region23: #{tpu_custom_call.1} parent=15 // pred_region
          %s201 = sand.u32 %s85, 1
          %s202 = scalar_lea.sflag [#allocation6], %s201
          %s203 = sand.u32 %s85, 1
          %s204 = smul.addr %s203, 2
          %s205 = scalar_lea.vmem [#allocation5], %s204
          %s206 = sadd.s32 %s30, %s31
          %s207 = smul.u32 2, %s206
          %s209 = ssub.s32 32, 32
          %210 = vsyncadd %s202, %s209
          %s211 = smul.addr %s29, 2
          %s212 = sadd.s32 %s207, %s211
          %s213 = smul.addr %s212, 16
          %s214 = scalar_lea.hbm %s1, %s213
          %s216 = sshll.u32 %s205, 4
          %s217 = int_to_ptr.vmem [resolvable:$true] %s216
          %219 = dma.hbm_to_vmem [thread:$0]  %s214, 32, %s217, %s202
        $region24: #{tpu_custom_call.1} parent=15 // pred_fallthru
          _
      $region16: #{tpu_custom_call.1} parent=5 // pred_fallthru
        _
      %p220 = scmp.le.s32.totalorder 1, %s22
      %p221 = scmp.lt.s32.totalorder %s22, 3
      %p222 = pnand %p220, %p221
      %p223 = pneg %p222
      // Predicated region
      $region25: #{tpu_custom_call.1} parent=5 // pred_check
        _
      $region26: #{tpu_custom_call.1} parent=5 // pred_check_branch
        %225 = sbr.rel (%p222) target = $region28
      $region27: #{tpu_custom_call.1} parent=5 // pred_region
        %s226 = ssub.s32 %s22, 1
        %s227 = sand.u32 %s58, 1
        %s228 = scalar_lea.sflag [#allocation3], %s227
        %s229 = sand.u32 %s58, 1
        %s230 = smul.addr %s229, 8
        %s231 = scalar_lea.vmem [#allocation2], %s230
        // Predicated region
        $region29: #{tpu_custom_call.1} parent=27 // pred_check
          %p232 = pneg %p71
        $region30: #{tpu_custom_call.1} parent=27 // pred_check_branch
          %234 = sbr.rel (%p232) target = $region32
        $region31: #{tpu_custom_call.1} parent=27 // pred_region
          %235 = dma.done %s228, 128
        $region32: #{tpu_custom_call.1} parent=27 // pred_fallthru
          _
        %s236 = sand.u32 %s88, 1
        %s237 = scalar_lea.sflag [#allocation6], %s236
        %s238 = sand.u32 %s88, 1
        %s239 = smul.addr %s238, 2
        %s240 = scalar_lea.vmem [#allocation5], %s239
        // Predicated region
        $region33: #{tpu_custom_call.1} parent=27 // pred_check
          %p241 = pneg %p101
        $region34: #{tpu_custom_call.1} parent=27 // pred_check_branch
          %243 = sbr.rel (%p241) target = $region36
        $region35: #{tpu_custom_call.1} parent=27 // pred_region
          %244 = dma.done %s237, 32
        $region36: #{tpu_custom_call.1} parent=27 // pred_fallthru
          _
        %s245 = sand.u32 %s58, 1
        %s246 = scalar_lea.sflag [#allocation3], %s245
        %s247 = sand.u32 %s58, 1
        %s248 = smul.addr %s247, 8
        %s249 = scalar_lea.vmem [#allocation2], %s248
        %p250 = pneg %p71
        %p251 = pneg %p68
        %s252 = sand.u32 %s88, 1
        %s253 = scalar_lea.sflag [#allocation6], %s252
        %s254 = sand.u32 %s88, 1
        %s255 = smul.addr %s254, 2
        %s256 = scalar_lea.vmem [#allocation5], %s255
        %p257 = pneg %p101
        %p258 = pneg %p98
        %p259 = pneg %p129
        %p260 = pneg %p126
        %s261 = sand.u32 %s116, 1
        %s262 = scalar_lea.sflag [#allocation4], %s261
        %s263 = sand.u32 %s116, 1
        %s264 = smul.addr %s263, 4
        %s265 = scalar_lea.vmem [#allocation7], %s264
        %p266 = pneg %p157
        %p267 = pneg %p154
        %s268 = sand.u32 %s144, 1
        %s269 = scalar_lea.sflag [#allocation9], %s268
        %s270 = sand.u32 %s144, 1
        %s271 = smul.addr %s270, 4
        %s272 = scalar_lea.vmem [#allocation8], %s271
        %s273 = sadd.s32 %s33, %s34
        %s274 = smul.u32 2, %s273
        %s275 = sadd.s32 %s33, %s34
        %s276 = smul.u32 2, %s275
        %p277 = scmp.eq.s32.totalorder %s34, 0
        // Predicated region
        $region37: #{tpu_custom_call.1} parent=27 // pred_check
          %p278 = pneg %p277
        $region38: #{tpu_custom_call.1} parent=27 // pred_check_branch
          %280 = sbr.rel (%p278) target = $region40
        $region39: #{tpu_custom_call.1} parent=27 // pred_region
          %281 = vst [vmem:[%s265] sm:$0xf] 0.0
          %282 = vst [vmem:[%s272] sm:$0xf] 0.0
        $region40: #{tpu_custom_call.1} parent=27 // pred_fallthru
          _
        %v283 = vld [vmem:[%s231] sm:$0xff]
        %v284 = vld [vmem:[%s240] sm:$0x3]
        %v286 = vcombine.high %v283, %v283
        %vm288 = vcmask 1043456
        %v289 = vsel %vm288, %v283, -inf
        %v290 = vrot.slane %v289, 4
        %v291 = vmax.f32 %v289, %v290
        %v292 = vrot.slane %v291, 2
        %v293 = vmax.f32 %v291, %v292
        %v294 = vrot.slane %v293, 1
        %v295 = vmax.f32 %v293, %v294
        %v296 = vsel %vm288, %v286, -inf
        %v297 = vrot.slane %v296, 4
        %v298 = vmax.f32 %v296, %v297
        %v299 = vrot.slane %v298, 2
        %v300 = vmax.f32 %v298, %v299
        %v301 = vrot.slane %v300, 1
        %v302 = vmax.f32 %v300, %v301
        %v305 = vcombine.low %v295, %v302
        %v307 = vsub.f32 %v283, %v305
        %v308 = vmul.f32 %v307, 1.442695
        %v309 = vpow.pop %v308
        %v311 = vcombine.high %v309, %v309
        %v313 = vsel %vm288, %v309, 0.0
        %v314 = vrot.slane %v313, 4
        %v315 = vadd.f32 %v313, %v314
        %v316 = vrot.slane %v315, 2
        %v317 = vadd.f32 %v315, %v316
        %v318 = vrot.slane %v317, 1
        %v319 = vadd.f32 %v317, %v318
        %v320 = vsel %vm288, %v311, 0.0
        %v321 = vrot.slane %v320, 4
        %v322 = vadd.f32 %v320, %v321
        %v323 = vrot.slane %v322, 2
        %v324 = vadd.f32 %v322, %v323
        %v325 = vrot.slane %v324, 1
        %v326 = vadd.f32 %v324, %v325
        %v327 = vrcp.pop %v319
        %v328 = vrcp.pop %v326
        %v331 = vcombine.low %v327, %v328
        %v333 = vmul.f32 %v309, %v331
        %v334 = vlaneseq
        %v335 = vshrl.u32 %v334, 7
        %v336 = vlaneseq
        %v337 = vshrl.u32 %v336, 7
        %v338 = vsub.s32 0, %v337
        %v339 = vrot.slane %v284, %v338
        %v340 = vlaneseq
        %v341 = vshrl.u32 %v340, 7
        %v342 = vsub.s32 1, %v341
        %v343 = vrot.slane %v284, %v342
        %vm344 = vcmp.eq.s32.totalorder %v335, %v339
        %vm345 = vcmp.eq.s32.totalorder %v335, %v343
        %v346 = vsel %vm344, 1, 0
        %v347 = vsel %vm345, 1, 0
        %v348 = vcvt.s32.f32 %v346
        %v349 = vcvt.s32.f32 %v347
        %v352 = vcombine.low %v348, %v349
        %v354 = vadd.f32 %v333, %v352
        %v355 = vld [vmem:[%s265] sm:$0xf]
        %v356 = vmul.f32 %v333, %v352
        %v358 = vrot.slane %v356, 4
        %v360 = vadd.f32 %v356, %v358
        %v361 = vadd.f32 %v355, %v360
        %362 = vst [vmem:[%s265] sm:$0xf] %v361
        %v363 = vld [vmem:[%s272] sm:$0xf]
        %v365 = vrot.slane %v354, 4
        %v367 = vadd.f32 %v354, %v365
        %v368 = vadd.f32 %v363, %v367
        %369 = vst [vmem:[%s272] sm:$0xf] %v368
        %s370 = sand.u32 %s116, 1
        %s371 = scalar_lea.sflag [#allocation4], %s370
        %s372 = sand.u32 %s116, 1
        %s373 = smul.addr %s372, 4
        %s374 = scalar_lea.vmem [#allocation7], %s373
        %s375 = sand.u32 %s144, 1
        %s376 = scalar_lea.sflag [#allocation9], %s375
        %s377 = sand.u32 %s144, 1
        %s378 = smul.addr %s377, 4
        %s379 = scalar_lea.vmem [#allocation8], %s378
        // Predicated region
        $region41: #{tpu_custom_call.1} parent=27 // pred_check
          %p380 = pneg %p126
        $region42: #{tpu_custom_call.1} parent=27 // pred_check_branch
          %382 = sbr.rel (%p380) target = $region44
        $region43: #{tpu_custom_call.1} parent=27 // pred_region
          %s384 = ssub.s32 64, 64
          %385 = vsyncadd %s371, %s384
          %s386 = sadd.s32 %s33, %s32
          %s387 = smul.addr %s386, 64
          %s388 = scalar_lea.hbm %s2, %s387
          %s390 = sshll.u32 %s374, 4
          %s391 = int_to_ptr.vmem [resolvable:$true] %s390
          %393 = dma.vmem_to_hbm [thread:$0]  %s391, 64, %s388, %s371
        $region44: #{tpu_custom_call.1} parent=27 // pred_fallthru
          _
        // Predicated region
        $region45: #{tpu_custom_call.1} parent=27 // pred_check
          %p394 = pneg %p154
        $region46: #{tpu_custom_call.1} parent=27 // pred_check_branch
          %396 = sbr.rel (%p394) target = $region48
        $region47: #{tpu_custom_call.1} parent=27 // pred_region
          %s398 = ssub.s32 64, 64
          %399 = vsyncadd %s376, %s398
          %s400 = sadd.s32 %s33, %s32
          %s401 = smul.addr %s400, 64
          %s402 = scalar_lea.hbm %s3, %s401
          %s404 = sshll.u32 %s379, 4
          %s405 = int_to_ptr.vmem [resolvable:$true] %s404
          %407 = dma.vmem_to_hbm [thread:$0]  %s405, 64, %s402, %s376
        $region48: #{tpu_custom_call.1} parent=27 // pred_fallthru
          _
      $region28: #{tpu_custom_call.1} parent=5 // pred_fallthru
        _
      %p408 = scmp.le.s32.totalorder 2, %s22
      // Predicated region
      $region49: #{tpu_custom_call.1} parent=5 // pred_check
        %p409 = pneg %p408
      $region50: #{tpu_custom_call.1} parent=5 // pred_check_branch
        %411 = sbr.rel (%p409) target = $region52
      $region51: #{tpu_custom_call.1} parent=5 // pred_region
        %s412 = ssub.s32 %s22, 2
        // Predicated region
        $region53: #{tpu_custom_call.1} parent=51 // pred_check
          %p413 = pneg %p132
        $region54: #{tpu_custom_call.1} parent=51 // pred_check_branch
          %415 = sbr.rel (%p413) target = $region56
        $region55: #{tpu_custom_call.1} parent=51 // pred_region
          %s416 = sand.u32 %s117, 1
          %s417 = scalar_lea.sflag [#allocation4], %s416
          %s418 = sand.u32 %s117, 1
          %s419 = smul.addr %s418, 4
          %s420 = scalar_lea.vmem [#allocation7], %s419
          %421 = dma.done %s417, 64
        $region56: #{tpu_custom_call.1} parent=51 // pred_fallthru
          _
        // Predicated region
        $region57: #{tpu_custom_call.1} parent=51 // pred_check
          %p422 = pneg %p160
        $region58: #{tpu_custom_call.1} parent=51 // pred_check_branch
          %424 = sbr.rel (%p422) target = $region60
        $region59: #{tpu_custom_call.1} parent=51 // pred_region
          %s425 = sand.u32 %s145, 1
          %s426 = scalar_lea.sflag [#allocation9], %s425
          %s427 = sand.u32 %s145, 1
          %s428 = smul.addr %s427, 4
          %s429 = scalar_lea.vmem [#allocation8], %s428
          %430 = dma.done %s426, 64
        $region60: #{tpu_custom_call.1} parent=51 // pred_fallthru
          _
      $region52: #{tpu_custom_call.1} parent=5 // pred_fallthru
        _
    $region6: #{tpu_custom_call.1} parent=1 // loop_footer
      %s26 = sadd.s32 1, %s22
    $region7: #{tpu_custom_call.1} parent=1 // loop_footer_branch
      %21 = sbr.rel target = $region3
    $region8: #{tpu_custom_call.1} parent=1 // loop_exit
      _
    %431 = vsyncpa [#allocation3], 1
    %s432 = scalar_lea.sflag [#allocation3], 1
    %433 = vsyncpa %s432, 1
    %434 = vsyncpa [#allocation6], 1
    %s435 = scalar_lea.sflag [#allocation6], 1
    %436 = vsyncpa %s435, 1
    %437 = vsyncpa [#allocation4], 1
    %s438 = scalar_lea.sflag [#allocation4], 1
    %439 = vsyncpa %s438, 1
    %440 = vsyncpa [#allocation9], 1
    %s441 = scalar_lea.sflag [#allocation9], 1
    %442 = vsyncpa %s441, 1

</llo_original>
